<compile_context>
chip_gen: v7x
topology: tpu7x:2x2x1
jax: 0.10.0
libtpu: 0.0.40
codegen_flags: <defaults>
</compile_context>

<pallas_src>
import functools

import jax
import jax.numpy as jnp
from jax.experimental import pallas as pl
from jax.experimental.pallas import tpu as pltpu

_LANE_CANDIDATES = (1024, 512, 256, 128)
_MIN_SPLIT_BYTES = 1 << 20          # arrays bigger than this get >= 2 grid steps


def _hw_budget():
    """Return (vmem_limit_bytes, max_block_bytes), generation-aware."""
    vmem_phys = None
    try:
        info = pltpu.get_tpu_info()
        vmem_phys = getattr(info, "vmem_capacity_bytes", None)
    except Exception:
        vmem_phys = None
    if vmem_phys is not None and vmem_phys >= 100 * (1 << 20):
        # v5e / v6e: 128 MiB physical VMEM -> 8 MiB blocks under a 64 MiB limit.
        return 64 * (1 << 20), 8 * (1 << 20)
    # v7x (64 MiB per TensorCore) or unknown: stay conservative.
    return 32 * (1 << 20), 4 * (1 << 20)


def _choose_tiling(bulk, dtype_bytes, max_block_bytes):
    """bulk is a multiple of 128.  Returns (lanes, rows, block_rows, grid)."""
    lanes = 128
    for cand in _LANE_CANDIDATES:
        if bulk % cand == 0:
            lanes = cand
            break
    rows = bulk // lanes

    # Budget block elems against the uint32 bits intermediate (4 B/elem).
    max_block_elems = max(8 * 128, max_block_bytes // 4)
    max_rows = max(8, (max_block_elems // lanes) // 8 * 8)   # multiple of 8

    if rows <= max_rows:
        block_rows = rows                                    # full-array block (legal)
        if bulk * dtype_bytes > _MIN_SPLIT_BYTES and rows >= 16:
            # Split so both v7x TensorCores run and DMA/compute can overlap.
            half = (rows + 1) // 2
            block_rows = ((half + 7) // 8) * 8               # (8,128)-legal
    else:
        block_rows = max_rows

    grid = pl.cdiv(rows, block_rows)                         # partial last block masked
    return lanes, rows, block_rows, grid


def _dropout_kernel_tpu(seed_ref, x_ref, o_ref, *, threshold, inv_keep):
    # Independent stream per grid step (seed mixed with program_id) so the
    # result does not depend on execution order -> grid axis can be "parallel".
    pltpu.prng_seed(seed_ref[0], pl.program_id(0))
    # TODO(synk): for bf16 inputs on v5e, draw one 32-bit word per two elements
    # to halve PRNG work; not needed for f32 (kernel stays HBM-bound).
    bits = pltpu.prng_random_bits(x_ref.shape)
    if bits.dtype != jnp.uint32:
        bits = pltpu.bitcast(bits, jnp.uint32)
    keep = bits < jnp.uint32(threshold)                      # uint32 threshold compare
    x = x_ref[...].astype(jnp.float32)
    o_ref[...] = jnp.where(keep, x * inv_keep, 0.0).astype(o_ref.dtype)


def _dropout_kernel_bits(x_ref, bits_ref, o_ref, *, threshold, inv_keep):
    # Portable body (non-TPU / interpret): random bits are passed in.
    keep = bits_ref[...] < jnp.uint32(threshold)
    x = x_ref[...].astype(jnp.float32)
    o_ref[...] = jnp.where(keep, x * inv_keep, 0.0).astype(o_ref.dtype)


def dropout_pallas(x, dropout_rate: float, seed: int = 0):
    """Training-mode dropout: zero with prob p, scale survivors by 1/(1-p)."""
    dropout_rate = float(dropout_rate)
    if dropout_rate <= 0.0:
        return x
    if dropout_rate >= 1.0:
        return jnp.zeros_like(x)
    keep_prob = 1.0 - dropout_rate
    inv_keep = 1.0 / keep_prob
    # keep iff bits < round(keep_prob * 2^32): no bits->float conversion.
    threshold = min(int(round(keep_prob * (1 << 32))), (1 << 32) - 1)

    orig_shape = x.shape
    n = x.size
    flat = x.reshape(-1)
    dtype_bytes = jnp.dtype(x.dtype).itemsize

    tail = n % 128                      # ragged remainder handled outside the kernel
    bulk = n - tail

    vmem_limit, max_block_bytes = _hw_budget()
    pieces = []

    if bulk:
        lanes, rows, block_rows, grid = _choose_tiling(bulk, dtype_bytes, max_block_bytes)
        x2d = (flat if tail == 0 else flat[:bulk]).reshape(rows, lanes)
        block = (block_rows, lanes)
        compiler_params = pltpu.CompilerParams(
            dimension_semantics=("parallel",),   # shard grid across TCs on v7x
            vmem_limit_bytes=vmem_limit,
        )

        if jax.default_backend() == "tpu":
            seed_arr = jnp.array([seed], dtype=jnp.int32)
            out2d = pl.pallas_call(
                functools.partial(_dropout_kernel_tpu,
                                  threshold=threshold, inv_keep=inv_keep),
                out_shape=jax.ShapeDtypeStruct((rows, lanes), x.dtype),
                grid_spec=pltpu.PrefetchScalarGridSpec(
                    num_scalar_prefetch=1,
                    grid=(grid,),
                    in_specs=[pl.BlockSpec(block, lambda i, seed_ref: (i, 0))],
                    out_specs=pl.BlockSpec(block, lambda i, seed_ref: (i, 0)),
                ),
                compiler_params=compiler_params,
            )(seed_arr, x2d)
        else:
            # The TPU hardware PRNG has no CPU lowering: draw bits outside.
            bits2d = jax.random.bits(jax.random.PRNGKey(seed), (rows, lanes),
                                     dtype=jnp.uint32)
            out2d = pl.pallas_call(
                functools.partial(_dropout_kernel_bits,
                                  threshold=threshold, inv_keep=inv_keep),
                out_shape=jax.ShapeDtypeStruct((rows, lanes), x.dtype),
                grid=(grid,),
                in_specs=[pl.BlockSpec(block, lambda i: (i, 0)),
                          pl.BlockSpec(block, lambda i: (i, 0))],
                out_specs=pl.BlockSpec(block, lambda i: (i, 0)),
                compiler_params=compiler_params,
            )(x2d, bits2d)

        if tail == 0:
            return out2d.reshape(orig_shape)     # pure reshape, no extra HBM pass
        pieces.append(out2d.reshape(-1))

    if tail:
        # <128 elements: negligible; plain jnp instead of pad/slice round trips.
        tail_vals = flat[bulk:].astype(jnp.float32)
        tail_bits = jax.random.bits(jax.random.PRNGKey(seed + 0x5DEECE6), (tail,),
                                    dtype=jnp.uint32)
        keep = tail_bits < jnp.uint32(threshold)
        pieces.append(jnp.where(keep, tail_vals * inv_keep, 0.0).astype(x.dtype))

    return jnp.concatenate(pieces).reshape(orig_shape)


class DropoutLayer:
    """JAX/Pallas equivalent of the PyTorch DropoutLayer module (training mode)."""

    def __init__(self, dropout_rate: float):
        self.dropout_rate = float(dropout_rate)

    def __call__(self, x, seed: int = 0):
        return dropout_pallas(x, self.dropout_rate, seed=seed)


if __name__ == "__main__":
    key = jax.random.PRNGKey(0)
    x = jax.random.normal(key, (2, 4, 16, 16), dtype=jnp.float32)  # NCHW

    layer = DropoutLayer(dropout_rate=0.3)
    y = jax.block_until_ready(layer(x, seed=42))

    # Sanity checks: shape/dtype preserved; survivors scaled exactly 1/(1-p);
    # dropped fraction roughly p (very loose statistical bound).
    assert y.shape == x.shape and y.dtype == x.dtype
    keep_prob = 0.7
    kept = y != 0
    ratio = jnp.where(kept, y / jnp.where(x == 0, 1.0, x), 1.0 / keep_prob)
    assert jnp.allclose(ratio, 1.0 / keep_prob, rtol=1e-5, atol=1e-5)
    drop_frac = float(1.0 - jnp.mean(kept.astype(jnp.float32)))
    assert 0.05 < drop_frac < 0.6, drop_frac

    print("KERNEL_OK")
</pallas_src>

<mosaic_0001>
module attributes {stable_mosaic.version = 11 : i64} {
  func.func @_dropout_kernel_bits(%arg0: i32, %arg1: memref<2x1024xf32, #tpu.memory_space<vmem>>, %arg2: memref<2x1024xi32, #tpu.memory_space<vmem>>, %arg3: memref<2x1024xf32, #tpu.memory_space<vmem>>) attributes {dimension_semantics = [#tpu.dimension_semantics<parallel>], iteration_bounds = array<i64: 1>, scalar_prefetch = 0 : i64, scratch_operands = 0 : i64, tpu.core_type = #tpu.core_type<tc>, window_params = [{transform_indices = @transform_0, window_bounds = array<i64: 2, 1024>}, {transform_indices = @transform_1, window_bounds = array<i64: 2, 1024>}, {transform_indices = @transform_2, window_bounds = array<i64: 2, 1024>}]} {
    %c0 = arith.constant 0 : index
    %c0_0 = arith.constant 0 : index
    %0 = vector.load %arg2[%c0, %c0_0] : memref<2x1024xi32, #tpu.memory_space<vmem>>, vector<2x1024xi32>
    %c-1288490189_i32 = arith.constant -1288490189 : i32
    %1 = vector.broadcast %c-1288490189_i32 : i32 to vector<2x1024xi32>
    %2 = arith.cmpi ult, %0, %1 : vector<2x1024xi32>
    %c0_1 = arith.constant 0 : index
    %c0_2 = arith.constant 0 : index
    %3 = vector.load %arg1[%c0_1, %c0_2] : memref<2x1024xf32, #tpu.memory_space<vmem>>, vector<2x1024xf32>
    %cst = arith.constant 1.42857146 : f32
    %4 = vector.broadcast %cst : f32 to vector<2x1024xf32>
    %5 = arith.mulf %3, %4 : vector<2x1024xf32>
    %cst_3 = arith.constant 0.000000e+00 : f32
    %6 = vector.broadcast %cst_3 : f32 to vector<2x1024xf32>
    %7 = arith.select %2, %5, %6 : vector<2x1024xi1>, vector<2x1024xf32>
    %c0_4 = arith.constant 0 : index
    %c0_5 = arith.constant 0 : index
    %8 = vector.load %arg3[%c0_4, %c0_5] : memref<2x1024xf32, #tpu.memory_space<vmem>>, vector<2x1024xf32>
    tpu.vector_store %arg3[%c0_4, %c0_5], %7 {strides = array<i32>} : memref<2x1024xf32, #tpu.memory_space<vmem>>, vector<2x1024xf32>,
    return
  }
  func.func @transform_0(%arg0: i32) -> (i32, i32) {
    %c0_i32 = arith.constant 0 : i32
    %c0_i32_0 = arith.constant 0 : i32
    return %arg0, %c0_i32 : i32, i32
  }
  func.func @transform_1(%arg0: i32) -> (i32, i32) {
    %c0_i32 = arith.constant 0 : i32
    %c0_i32_0 = arith.constant 0 : i32
    return %arg0, %c0_i32 : i32, i32
  }
  func.func @transform_2(%arg0: i32) -> (i32, i32) {
    %c0_i32 = arith.constant 0 : i32
    %c0_i32_0 = arith.constant 0 : i32
    return %arg0, %c0_i32 : i32, i32
  }
}

</mosaic_0001>

<llo_original>
// kernel: tpu_custom_call.1
$region0: #{tpu_custom_call.1}
  #allocation0 [shape = 'u32[]', space=smem, size = 0x4, offset = 0x4, fixed_abs, tag = 'smem constant byte address 0x4 - core index']
  #allocation1 [shape = 'u32[144,128]{1,0:T(1,128)}', space=vmem, size = 0x12000, scoped, tag = 'internal scratch']
  %s0 = inlined_call_operand.hbm [shape: f32[2,1024], index: 0, kind: input, shape index: {}]
  %s1 = inlined_call_operand.hbm [shape: u32[2,1024], index: 1, kind: input, shape index: {}]
  %s2 = inlined_call_operand.hbm [shape: f32[2,1024], index: 2, kind: output, shape index: {}]
  %s3 = sld [smem:[#allocation0]]
  $region26: #{tpu_custom_call.1} parent=0
    _
  %s5 = ssub.s32 1, %s3
  %s6 = scalar_select 0, %s5, %s3
  $region1: #{tpu_custom_call.1} parent=0
    #allocation2 [shape = 'u8[8192]{0}', space=vmem, size = 0x2000, scoped, tag = 'input window, operand 0, single buffered']
    #allocation3 [shape = 's32[1]{0}', space=sflag, size = 0x4, scoped, tag = 'scoped memory for tpu_custom_call.1']
    #allocation4 [shape = 's32[1]{0}', space=sflag, size = 0x4, scoped, tag = 'scoped memory for tpu_custom_call.1']
    #allocation5 [shape = 'u8[8192]{0}', space=vmem, size = 0x2000, scoped, tag = 'input window, operand 1, single buffered']
    #allocation6 [shape = 's32[1]{0}', space=sflag, size = 0x4, scoped, tag = 'scoped memory for tpu_custom_call.1']
    #allocation7 [shape = 'u8[8192]{0}', space=vmem, size = 0x2000, scoped, tag = 'output window, operand 0, single buffered']
    %7 = vsyncpa [#allocation3], 0
    %8 = vsyncpa [#allocation6], 0
    %9 = vsyncpa [#allocation4], 0
    // Predicated region
    $region2: #{tpu_custom_call.1} parent=1 // pred_check
      _
    $region3: #{tpu_custom_call.1} parent=1 // pred_check_branch
      %11 = sbr.rel (0) target = $region5
    $region4: #{tpu_custom_call.1} parent=1 // pred_region
      %s13 = ssub.s32 256, 256
      %14 = vsyncadd [#allocation3], %s13
      %s16 = sshll.u32 [#allocation2], 4
      %s17 = int_to_ptr.vmem [resolvable:$true] %s16
      %19 = dma.hbm_to_vmem [thread:$0]  %s0, 256, %s17, [#allocation3]
    $region5: #{tpu_custom_call.1} parent=1 // pred_fallthru
      _
    // Predicated region
    $region6: #{tpu_custom_call.1} parent=1 // pred_check
      _
    $region7: #{tpu_custom_call.1} parent=1 // pred_check_branch
      %21 = sbr.rel (0) target = $region9
    $region8: #{tpu_custom_call.1} parent=1 // pred_region
      %s23 = ssub.s32 256, 256
      %24 = vsyncadd [#allocation6], %s23
      %s26 = sshll.u32 [#allocation5], 4
      %s27 = int_to_ptr.vmem [resolvable:$true] %s26
      %29 = dma.hbm_to_vmem [thread:$0]  %s1, 256, %s27, [#allocation6]
    $region9: #{tpu_custom_call.1} parent=1 // pred_fallthru
      _
    // Predicated region
    $region10: #{tpu_custom_call.1} parent=1 // pred_check
      _
    $region11: #{tpu_custom_call.1} parent=1 // pred_check_branch
      %31 = sbr.rel (0) target = $region13
    $region12: #{tpu_custom_call.1} parent=1 // pred_region
      %32 = dma.done [#allocation3], 256
    $region13: #{tpu_custom_call.1} parent=1 // pred_fallthru
      _
    // Predicated region
    $region14: #{tpu_custom_call.1} parent=1 // pred_check
      _
    $region15: #{tpu_custom_call.1} parent=1 // pred_check_branch
      %34 = sbr.rel (0) target = $region17
    $region16: #{tpu_custom_call.1} parent=1 // pred_region
      %35 = dma.done [#allocation6], 256
    $region17: #{tpu_custom_call.1} parent=1 // pred_fallthru
      _
    %v36 = vld [vmem:[#allocation5] sm:$0xff]
    %v37 = vld [vmem:[#allocation5 + $0x8] sm:$0xff]
    %vm38 = vcmp.lt.u32.totalorder %v36, 3006477107
    %vm39 = vcmp.lt.u32.totalorder %v37, 3006477107
    %v40 = vld [vmem:[#allocation2] sm:$0xff]
    %v41 = vld [vmem:[#allocation2 + $0x8] sm:$0xff]
    %v42 = vmul.f32 %v40, 1.4285715
    %v43 = vmul.f32 %v41, 1.4285715
    %v44 = vsel %vm38, %v42, 0.0
    %v45 = vsel %vm39, %v43, 0.0
    %46 = vst [vmem:[#allocation7] sm:$0xff] %v44
    %47 = vst [vmem:[#allocation7 + $0x8] sm:$0xff] %v45
    // Predicated region
    $region18: #{tpu_custom_call.1} parent=1 // pred_check
      _
    $region19: #{tpu_custom_call.1} parent=1 // pred_check_branch
      %49 = sbr.rel (0) target = $region21
    $region20: #{tpu_custom_call.1} parent=1 // pred_region
      %s51 = ssub.s32 256, 256
      %52 = vsyncadd [#allocation4], %s51
      %s54 = sshll.u32 [#allocation7], 4
      %s55 = int_to_ptr.vmem [resolvable:$true] %s54
      %57 = dma.vmem_to_hbm [thread:$0]  %s55, 256, %s2, [#allocation4]
    $region21: #{tpu_custom_call.1} parent=1 // pred_fallthru
      _
    // Predicated region
    $region22: #{tpu_custom_call.1} parent=1 // pred_check
      _
    $region23: #{tpu_custom_call.1} parent=1 // pred_check_branch
      %59 = sbr.rel (0) target = $region25
    $region24: #{tpu_custom_call.1} parent=1 // pred_region
      %60 = dma.done [#allocation4], 256
    $region25: #{tpu_custom_call.1} parent=1 // pred_fallthru
      _
    %61 = vsyncpa [#allocation3], 1
    %62 = vsyncpa [#allocation6], 1
    %63 = vsyncpa [#allocation4], 1

</llo_original>
